<compile_context>
chip_gen: v7x
topology: tpu7x:2x2x1
jax: 0.10.0
libtpu: 0.0.40
codegen_flags: <defaults>
</compile_context>

<pallas_src>
import jax
import jax.numpy as jnp
from jax.experimental import pallas as pl
from jax.experimental.pallas import tpu as pltpu


def _round_up(n, m):
    return ((n + m - 1) // m) * m


def _pick_tm(B, tm_max=512):
    """Batch tile: multiple of 8, capped, and >=2 grid steps when B > 8."""
    tm = _round_up(min(B, tm_max), 8)
    if B > 8:
        # Force at least two grid steps so the "parallel" batch axis can shard
        # across v7x's two TensorCores; one extra grid step costs ~0.35 us.
        tm = min(tm, _round_up((B + 1) // 2, 8))
    return max(tm, 8)


def stg_emb_kernel(x_ref, w1_ref, w2_ref, w3_ref, b_ref, out_ref):
    # Static (padded) layer widths from the Ref shapes (trace-time constants).
    h1p = w1_ref.shape[1]
    h2p = w2_ref.shape[1]
    op = w3_ref.shape[1]
    cdt = w1_ref.dtype          # MXU operand dtype (f32 or bf16)

    # In-kernel cast of the batch tile (free VPU op; no extra HBM pass).
    x = x_ref[...].astype(cdt)                                    # (tm, D)

    # Hidden layer 1: Linear (hard-sigmoid gate pre-folded into W1) + ReLU.
    h1 = jnp.dot(x, w1_ref[...], preferred_element_type=jnp.float32)
    h1 = jnp.maximum(h1 + b_ref[0:1, :h1p], 0.0)                  # (tm, H1p)

    # Hidden layer 2: Linear + ReLU.
    h2 = jnp.dot(h1.astype(cdt), w2_ref[...],
                 preferred_element_type=jnp.float32)
    h2 = jnp.maximum(h2 + b_ref[1:2, :h2p], 0.0)                  # (tm, H2p)

    # Final Linear (no activation).
    out = jnp.dot(h2.astype(cdt), w3_ref[...],
                  preferred_element_type=jnp.float32)
    out_ref[...] = (out + b_ref[2:3, :op]).astype(out_ref.dtype)


def prepare_stg_params(mu, w1, b1, w2, b2, w3, b3, *,
                       compute_dtype=jnp.bfloat16, pad_output=True):
    """Batch-independent preprocessing. Call ONCE at init / param update."""
    D, H1 = w1.shape
    H2 = w2.shape[1]
    O = w3.shape[1]

    # Fold the hard-sigmoid gate into W1 (eval mode, mathematically exact):
    #   (x * g) @ W1 == x @ (diag(g) @ W1)
    gate = jnp.clip(mu.reshape(-1).astype(jnp.float32) + 0.5, 0.0, 1.0)   # (D,)
    w1g = w1.astype(jnp.float32) * gate[:, None]

    # Pad hidden (and optionally output) dims to multiples of 128. Zero padding
    # keeps the math exact; padded output columns are sliced off (or kept, see
    # return_padded) after the call.
    H1p = _round_up(H1, 128)
    H2p = _round_up(H2, 128)
    Op = _round_up(O, 128) if pad_output else O
    Pmax = max(H1p, H2p, Op)

    w1p = jnp.zeros((D, H1p), jnp.float32).at[:, :H1].set(w1g)
    w2p = jnp.zeros((H1p, H2p), jnp.float32).at[:H1, :H2].set(
        w2.astype(jnp.float32))
    w3p = jnp.zeros((H2p, Op), jnp.float32).at[:H2, :O].set(
        w3.astype(jnp.float32))
    b_all = (jnp.zeros((3, Pmax), jnp.float32)
             .at[0, :H1].set(b1.reshape(-1).astype(jnp.float32))
             .at[1, :H2].set(b2.reshape(-1).astype(jnp.float32))
             .at[2, :O].set(b3.reshape(-1).astype(jnp.float32)))

    # MXU operands in compute_dtype (bf16 default); accumulation stays f32
    # inside the kernel. NOTE: with bf16 the folded gate*W1 product is bf16-
    # quantized (gate values near 0.5+mu lose ~3 decimal digits).
    return {
        "w1": w1p.astype(compute_dtype),
        "w2": w2p.astype(compute_dtype),
        "w3": w3p.astype(compute_dtype),
        "b": b_all,                       # biases stay f32 (added post-accum)
        "out_dim": O,
    }


def stg_emb_forward(x, params, *, tm_max=512, out_dtype=jnp.float32,
                    return_padded=False):
    B, D = x.shape
    w1p, w2p, w3p, b_all = params["w1"], params["w2"], params["w3"], params["b"]
    O = params["out_dim"]
    assert w1p.shape[0] == D, "input_dim mismatch between x and prepared params"
    H1p = w1p.shape[1]
    H2p = w2p.shape[1]
    Ocols = w3p.shape[1]
    Pmax = b_all.shape[1]

    tm = _pick_tm(B, tm_max)
    grid = (pl.cdiv(B, tm),)          # ragged last tile handled by masked OOB

    # Explicit VMEM budget: double-buffered x/out tiles, single-buffered
    # weights/bias, plus intermediate vregs; 2x safety margin, capped at 64 MiB.
    csize = jnp.dtype(w1p.dtype).itemsize
    est = (2 * tm * D * jnp.dtype(x.dtype).itemsize
           + (D * H1p + H1p * H2p + H2p * Ocols) * csize
           + 3 * Pmax * 4
           + 2 * tm * Ocols * jnp.dtype(out_dtype).itemsize
           + tm * (H1p + H2p + Ocols) * 4)
    vmem_limit = int(min(max(2 * est, 16 * 2**20), 64 * 2**20))

    def weight_spec(shape):
        # Constant block index -> single buffer (double buffering gives zero
        # overlap benefit and just doubles resident weight VMEM).
        return pl.BlockSpec(shape, lambda i: (0, 0),
                            pipeline_mode=pl.Buffered(1))

    out = pl.pallas_call(
        stg_emb_kernel,
        out_shape=jax.ShapeDtypeStruct((B, Ocols), out_dtype),
        grid_spec=pltpu.PrefetchScalarGridSpec(
            num_scalar_prefetch=0,
            grid=grid,
            in_specs=[
                pl.BlockSpec((tm, D), lambda i: (i, 0)),   # x tile over batch
                weight_spec((D, H1p)),                     # W1 (gate folded)
                weight_spec((H1p, H2p)),                   # W2
                weight_spec((H2p, Ocols)),                 # W3
                weight_spec((3, Pmax)),                    # stacked biases
            ],
            out_specs=pl.BlockSpec((tm, Ocols), lambda i: (i, 0)),
        ),
        compiler_params=pltpu.CompilerParams(
            dimension_semantics=("parallel",),   # shards batch over v7x's 2 TCs
            vmem_limit_bytes=vmem_limit),
    )(x, w1p, w2p, w3p, b_all)

    if return_padded or Ocols == O:
        return out
    # Lane-padding slice; skip via return_padded=True if downstream can consume
    # the padded columns (saves one HBM pass over the output).
    return out[:, :O]


def reference_forward(x, mu, w1, b1, w2, b2, w3, b3):
    gate = jnp.clip(mu + 0.5, 0.0, 1.0)
    xg = x * gate
    h1 = jnp.maximum(xg @ w1 + b1, 0.0)
    h2 = jnp.maximum(h1 @ w2 + b2, 0.0)
    return h2 @ w3 + b3


if __name__ == "__main__":
    # Small shapes consistent with the module: flat feature input -> MLP embedding.
    batch = 16
    input_dim = 16
    hidden_dims = [32, 32]
    output_dim = 8

    key = jax.random.PRNGKey(0)
    ks = jax.random.split(key, 8)

    x = jax.random.normal(ks[0], (batch, input_dim), dtype=jnp.float32)

    # FeatureSelector.mu ~ 0.01 * randn(input_dim)
    mu = 0.01 * jax.random.normal(ks[1], (1, input_dim), dtype=jnp.float32)

    # Deterministic synthetic weights (stored as [in, out], i.e. PyTorch W.T).
    w1 = jax.random.normal(ks[2], (input_dim, hidden_dims[0]), dtype=jnp.float32) * 0.1
    b1 = jax.random.normal(ks[3], (1, hidden_dims[0]), dtype=jnp.float32) * 0.1
    w2 = jax.random.normal(ks[4], (hidden_dims[0], hidden_dims[1]), dtype=jnp.float32) * 0.1
    b2 = jax.random.normal(ks[5], (1, hidden_dims[1]), dtype=jnp.float32) * 0.1
    w3 = jax.random.normal(ks[6], (hidden_dims[1], output_dim), dtype=jnp.float32) * 0.1
    b3 = jax.random.normal(ks[7], (1, output_dim), dtype=jnp.float32) * 0.1

    ref = reference_forward(x, mu, w1, b1, w2, b2, w3, b3)

    # Param preprocessing hoisted out of the forward path: done once, reused.
    params_f32 = prepare_stg_params(mu, w1, b1, w2, b2, w3, b3,
                                    compute_dtype=jnp.float32)
    params_bf16 = prepare_stg_params(mu, w1, b1, w2, b2, w3, b3)  # bf16 default
    params_f32_nopad = prepare_stg_params(mu, w1, b1, w2, b2, w3, b3,
                                          compute_dtype=jnp.float32,
                                          pad_output=False)

    # 1) fp32, lane-dense padded output, 2-step batch grid (megacore split).
    out = jax.block_until_ready(stg_emb_forward(x, params_f32))
    assert out.shape == (batch, output_dim)
    assert jnp.allclose(out, ref, atol=1e-4, rtol=1e-4), "fp32 mismatch vs reference"

    # 2) ragged batch (B=12) -> partial final tile via masked OOB reads/writes.
    out12 = jax.block_until_ready(stg_emb_forward(x[:12], params_f32))
    assert out12.shape == (12, output_dim)
    assert jnp.allclose(out12, ref[:12], atol=1e-4, rtol=1e-4), "ragged-batch mismatch"

    # 3) bf16 compute dtype (default; fast MXU path), f32 accumulation.
    out_bf16 = jax.block_until_ready(stg_emb_forward(x, params_bf16))
    assert jnp.allclose(out_bf16, ref, atol=5e-2, rtol=5e-2), "bf16 mismatch vs reference"

    # 4) unpadded (masked-store) output block: ~16x fewer writeback bytes (v5e).
    out_np = jax.block_until_ready(stg_emb_forward(x, params_f32_nopad))
    assert out_np.shape == (batch, output_dim)
    assert jnp.allclose(out_np, ref, atol=1e-4, rtol=1e-4), "unpadded-output mismatch"

    # 5) bf16 output dtype to halve writeback bytes further.
    out_bfo = jax.block_until_ready(
        stg_emb_forward(x, params_bf16, out_dtype=jnp.bfloat16))
    assert jnp.allclose(out_bfo.astype(jnp.float32), ref, atol=5e-2, rtol=5e-2), \
        "bf16-output mismatch"

    print("KERNEL_OK")
</pallas_src>

<mosaic_0001>
module attributes {stable_mosaic.version = 11 : i64} {
  func.func @stg_emb_kernel(%arg0: i32, %arg1: memref<8x16xf32, #tpu.memory_space<vmem>>, %arg2: memref<16x128xf32, #tpu.memory_space<vmem>>, %arg3: memref<128x128xf32, #tpu.memory_space<vmem>>, %arg4: memref<128x128xf32, #tpu.memory_space<vmem>>, %arg5: memref<3x128xf32, #tpu.memory_space<vmem>>, %arg6: memref<8x128xf32, #tpu.memory_space<vmem>>) attributes {dimension_semantics = [#tpu.dimension_semantics<parallel>], iteration_bounds = array<i64: 2>, scalar_prefetch = 0 : i64, scratch_operands = 0 : i64, tpu.core_type = #tpu.core_type<tc>, window_params = [{transform_indices = @transform_0, window_bounds = array<i64: 8, 16>}, {pipeline_mode = #tpu.pipeline_mode<synchronous>, transform_indices = @transform_1, window_bounds = array<i64: 16, 128>}, {pipeline_mode = #tpu.pipeline_mode<synchronous>, transform_indices = @transform_2, window_bounds = array<i64: 128, 128>}, {pipeline_mode = #tpu.pipeline_mode<synchronous>, transform_indices = @transform_3, window_bounds = array<i64: 128, 128>}, {pipeline_mode = #tpu.pipeline_mode<synchronous>, transform_indices = @transform_4, window_bounds = array<i64: 3, 128>}, {transform_indices = @transform_5, window_bounds = array<i64: 8, 128>}]} {
    %c0 = arith.constant 0 : index
    %c0_0 = arith.constant 0 : index
    %0 = vector.load %arg1[%c0, %c0_0] : memref<8x16xf32, #tpu.memory_space<vmem>>, vector<8x16xf32>
    %c0_1 = arith.constant 0 : index
    %c0_2 = arith.constant 0 : index
    %1 = vector.load %arg2[%c0_1, %c0_2] : memref<16x128xf32, #tpu.memory_space<vmem>>, vector<16x128xf32>
    %cst = arith.constant dense<0.000000e+00> : vector<8x128xf32>
    %2 = tpu.matmul %0, %1, %cst {dimension_numbers = #tpu.dot_dimension_numbers<[1], [0], [0], [1], [0, 0, 1, 1], [], []>} : vector<8x16xf32>, vector<16x128xf32>, vector<8x128xf32> -> vector<8x128xf32>
    %c0_3 = arith.constant 0 : index
    %c0_4 = arith.constant 0 : index
    %3 = vector.load %arg5[%c0_3, %c0_4] : memref<3x128xf32, #tpu.memory_space<vmem>>, vector<1x128xf32>
    %4 = vector.broadcast %3 : vector<1x128xf32> to vector<8x128xf32>
    %5 = arith.addf %2, %4 : vector<8x128xf32>
    %cst_5 = arith.constant 0.000000e+00 : f32
    %6 = vector.broadcast %cst_5 : f32 to vector<8x128xf32>
    %7 = arith.maximumf %5, %6 : vector<8x128xf32>
    %c0_6 = arith.constant 0 : index
    %c0_7 = arith.constant 0 : index
    %8 = vector.load %arg3[%c0_6, %c0_7] : memref<128x128xf32, #tpu.memory_space<vmem>>, vector<128x128xf32>
    %cst_8 = arith.constant dense<0.000000e+00> : vector<8x128xf32>
    %9 = tpu.matmul %7, %8, %cst_8 {dimension_numbers = #tpu.dot_dimension_numbers<[1], [0], [0], [1], [0, 0, 1, 1], [], []>} : vector<8x128xf32>, vector<128x128xf32>, vector<8x128xf32> -> vector<8x128xf32>
    %c1 = arith.constant 1 : index
    %c0_9 = arith.constant 0 : index
    %10 = vector.load %arg5[%c1, %c0_9] : memref<3x128xf32, #tpu.memory_space<vmem>>, vector<1x128xf32>
    %11 = vector.broadcast %10 : vector<1x128xf32> to vector<8x128xf32>
    %12 = arith.addf %9, %11 : vector<8x128xf32>
    %cst_10 = arith.constant 0.000000e+00 : f32
    %13 = vector.broadcast %cst_10 : f32 to vector<8x128xf32>
    %14 = arith.maximumf %12, %13 : vector<8x128xf32>
    %c0_11 = arith.constant 0 : index
    %c0_12 = arith.constant 0 : index
    %15 = vector.load %arg4[%c0_11, %c0_12] : memref<128x128xf32, #tpu.memory_space<vmem>>, vector<128x128xf32>
    %cst_13 = arith.constant dense<0.000000e+00> : vector<8x128xf32>
    %16 = tpu.matmul %14, %15, %cst_13 {dimension_numbers = #tpu.dot_dimension_numbers<[1], [0], [0], [1], [0, 0, 1, 1], [], []>} : vector<8x128xf32>, vector<128x128xf32>, vector<8x128xf32> -> vector<8x128xf32>
    %c2 = arith.constant 2 : index
    %c0_14 = arith.constant 0 : index
    %17 = vector.load %arg5[%c2, %c0_14] : memref<3x128xf32, #tpu.memory_space<vmem>>, vector<1x128xf32>
    %18 = vector.broadcast %17 : vector<1x128xf32> to vector<8x128xf32>
    %19 = arith.addf %16, %18 : vector<8x128xf32>
    %c0_15 = arith.constant 0 : index
    %c0_16 = arith.constant 0 : index
    %20 = vector.load %arg6[%c0_15, %c0_16] : memref<8x128xf32, #tpu.memory_space<vmem>>, vector<8x128xf32>
    tpu.vector_store %arg6[%c0_15, %c0_16], %19 {strides = array<i32>} : memref<8x128xf32, #tpu.memory_space<vmem>>, vector<8x128xf32>,
    return
  }
  func.func @transform_0(%arg0: i32) -> (i32, i32) {
    %c0_i32 = arith.constant 0 : i32
    %c0_i32_0 = arith.constant 0 : i32
    return %arg0, %c0_i32 : i32, i32
  }
  func.func @transform_1(%arg0: i32) -> (i32, i32) {
    %c0_i32 = arith.constant 0 : i32
    %c0_i32_0 = arith.constant 0 : i32
    %c0_i32_1 = arith.constant 0 : i32
    return %c0_i32, %c0_i32_0 : i32, i32
  }
  func.func @transform_2(%arg0: i32) -> (i32, i32) {
    %c0_i32 = arith.constant 0 : i32
    %c0_i32_0 = arith.constant 0 : i32
    %c0_i32_1 = arith.constant 0 : i32
    return %c0_i32, %c0_i32_0 : i32, i32
  }
  func.func @transform_3(%arg0: i32) -> (i32, i32) {
    %c0_i32 = arith.constant 0 : i32
    %c0_i32_0 = arith.constant 0 : i32
    %c0_i32_1 = arith.constant 0 : i32
    return %c0_i32, %c0_i32_0 : i32, i32
  }
  func.func @transform_4(%arg0: i32) -> (i32, i32) {
    %c0_i32 = arith.constant 0 : i32
    %c0_i32_0 = arith.constant 0 : i32
    %c0_i32_1 = arith.constant 0 : i32
    return %c0_i32, %c0_i32_0 : i32, i32
  }
  func.func @transform_5(%arg0: i32) -> (i32, i32) {
    %c0_i32 = arith.constant 0 : i32
    %c0_i32_0 = arith.constant 0 : i32
    return %arg0, %c0_i32 : i32, i32
  }
}

</mosaic_0001>

<llo_original>
// kernel: tpu_custom_call.1
$region0: #{tpu_custom_call.1}
  #allocation0 [shape = 'u32[]', space=smem, size = 0x4, offset = 0x4, fixed_abs, tag = 'smem constant byte address 0x4 - core index']
  #allocation1 [shape = 'u32[144,128]{1,0:T(1,128)}', space=vmem, size = 0x12000, scoped, tag = 'internal scratch']
  %s0 = inlined_call_operand.hbm [shape: f32[16,16], index: 0, kind: input, shape index: {}]
  %s1 = inlined_call_operand.hbm [shape: f32[16,128], index: 1, kind: input, shape index: {}]
  %s2 = inlined_call_operand.hbm [shape: f32[128,128], index: 2, kind: input, shape index: {}]
  %s3 = inlined_call_operand.hbm [shape: f32[128,128], index: 3, kind: input, shape index: {}]
  %s4 = inlined_call_operand.vmem [shape: f32[3,128], index: 4, kind: input, shape index: {}]
  %s5 = inlined_call_operand.hbm [shape: f32[16,128], index: 5, kind: output, shape index: {}]
  %s6 = sld [smem:[#allocation0]]
  $region69: #{tpu_custom_call.1} parent=0
    _
  %s8 = ssub.s32 1, %s6
  %s9 = scalar_select 0, %s8, %s6
  $region1: #{tpu_custom_call.1} parent=0
    #allocation2 [shape = 'u8[8192]{0}', space=vmem, size = 0x2000, scoped, tag = 'input window, operand 0']
    #allocation3 [shape = 's32[2]{0}', space=sflag, size = 0x8, scoped, tag = 'scoped memory for tpu_custom_call.1']
    #allocation4 [shape = 's32[2]{0}', space=sflag, size = 0x8, scoped, tag = 'scoped memory for tpu_custom_call.1']
    #allocation5 [shape = 'u8[8192]{0}', space=vmem, size = 0x2000, scoped, tag = 'input window, operand 1, single buffered']
    #allocation6 [shape = 's32[1]{0}', space=sflag, size = 0x4, scoped, tag = 'scoped memory for tpu_custom_call.1']
    #allocation7 [shape = 'u8[65536]{0}', space=vmem, size = 0x10000, scoped, tag = 'input window, operand 2, single buffered']
    #allocation8 [shape = 'u8[65536]{0}', space=vmem, size = 0x10000, scoped, tag = 'input window, operand 3, single buffered']
    #allocation9 [shape = 's32[1]{0}', space=sflag, size = 0x4, scoped, tag = 'scoped memory for tpu_custom_call.1']
    #allocation10 [shape = 'u8[8192]{0}', space=vmem, size = 0x2000, scoped, tag = 'output window, operand 0']
    %10 = vsyncpa [#allocation3], 0
    %s11 = scalar_lea.sflag [#allocation3], 1
    %12 = vsyncpa %s11, 0
    %13 = vsyncpa [#allocation6], 0
    %14 = vsyncpa [#allocation9], 0
    %15 = vsyncpa [#allocation4], 0
    %s16 = scalar_lea.sflag [#allocation4], 1
    %17 = vsyncpa %s16, 0
    loop: start=0, step=1, limit=4
    $region2: #{tpu_custom_call.1} parent=1 // loop_pre_header
      _
    $region3: #{tpu_custom_call.1} parent=1 // loop_header
      %s19 = sphi 0, %s23
      %p20 = scmp.ge.s32.totalorder %s19, 4
      %s29 = sphi 0, %s31
      %s32 = sphi 0, %s29
      %s33 = sphi 0, %s32
      %s49 = sphi 0, %s33
      %s53 = sphi 0, %s53
      %s55 = sphi 0, %s53
      %s56 = sphi 0, %s55
      %s70 = sphi 0, %s56
      %s74 = sphi 0, %s74
      %s76 = sphi 0, %s74
      %s77 = sphi 0, %s76
      %s91 = sphi 0, %s77
      %s95 = sphi 0, %s95
      %s97 = sphi 0, %s95
      %s98 = sphi 0, %s97
      %s112 = sphi 0, %s98
      %s116 = sphi 0, %s116
      %s118 = sphi 0, %s116
      %s119 = sphi 0, %s118
      %s133 = sphi 0, %s119
      %s139 = sphi 0, %s141
      %s142 = sphi 0, %s139
      %s143 = sphi 0, %s142
      %s159 = sphi 0, %s143
    $region4: #{tpu_custom_call.1} parent=1 // loop_header_branch
      %22 = sbr.rel (%p20) target = $region8
    $region5: #{tpu_custom_call.1} parent=1 // loop_body
      %s24 = ssub.s32 %s19, 1
      %s25 = ssub.s32 %s19, 2
      %s26 = sadd.s32 %s19, 1
      %s27 = ssub.s32 %s19, %s26
      %p28 = scmp.eq.s32.totalorder %s27, 0
      %s30 = sadd.s32 %s29, 1
      %s31 = scalar_select %p28, %s29, %s30
      %p34 = pneg %p28
      %p35 = scmp.eq.s32.totalorder %s19, 1
      %p36 = por %p34, %p35
      %p37 = scmp.ne.s32.totalorder %s29, %s32
      %p38 = scmp.eq.s32.totalorder %s19, 0
      %p39 = por %p37, %p38
      %p40 = scmp.ne.s32.totalorder %s29, %s32
      %p41 = scmp.eq.s32.totalorder %s24, 1
      %p42 = por %p40, %p41
      %p43 = scmp.ne.s32.totalorder %s32, %s33
      %p44 = scmp.eq.s32.totalorder %s24, 0
      %p45 = por %p43, %p44
      %p46 = scmp.ne.s32.totalorder %s32, %s33
      %p47 = scmp.eq.s32.totalorder %s25, 1
      %p48 = por %p46, %p47
      %p50 = scmp.ne.s32.totalorder %s33, %s49
      %p51 = scmp.eq.s32.totalorder %s25, 0
      %p52 = por %p50, %p51
      %s54 = sadd.s32 %s53, 1
      %p57 = scmp.eq.s32.totalorder %s19, 1
      %p58 = scmp.ne.s32.totalorder %s53, %s55
      %p59 = scmp.eq.s32.totalorder %s19, 0
      %p60 = por %p58, %p59
      %p61 = scmp.ne.s32.totalorder %s53, %s55
      %p62 = scmp.eq.s32.totalorder %s24, 1
      %p63 = por %p61, %p62
      %p64 = scmp.ne.s32.totalorder %s55, %s56
      %p65 = scmp.eq.s32.totalorder %s24, 0
      %p66 = por %p64, %p65
      %p67 = scmp.ne.s32.totalorder %s55, %s56
      %p68 = scmp.eq.s32.totalorder %s25, 1
      %p69 = por %p67, %p68
      %p71 = scmp.ne.s32.totalorder %s56, %s70
      %p72 = scmp.eq.s32.totalorder %s25, 0
      %p73 = por %p71, %p72
      %s75 = sadd.s32 %s74, 1
      %p78 = scmp.eq.s32.totalorder %s19, 1
      %p79 = scmp.ne.s32.totalorder %s74, %s76
      %p80 = scmp.eq.s32.totalorder %s19, 0
      %p81 = por %p79, %p80
      %p82 = scmp.ne.s32.totalorder %s74, %s76
      %p83 = scmp.eq.s32.totalorder %s24, 1
      %p84 = por %p82, %p83
      %p85 = scmp.ne.s32.totalorder %s76, %s77
      %p86 = scmp.eq.s32.totalorder %s24, 0
      %p87 = por %p85, %p86
      %p88 = scmp.ne.s32.totalorder %s76, %s77
      %p89 = scmp.eq.s32.totalorder %s25, 1
      %p90 = por %p88, %p89
      %p92 = scmp.ne.s32.totalorder %s77, %s91
      %p93 = scmp.eq.s32.totalorder %s25, 0
      %p94 = por %p92, %p93
      %s96 = sadd.s32 %s95, 1
      %p99 = scmp.eq.s32.totalorder %s19, 1
      %p100 = scmp.ne.s32.totalorder %s95, %s97
      %p101 = scmp.eq.s32.totalorder %s19, 0
      %p102 = por %p100, %p101
      %p103 = scmp.ne.s32.totalorder %s95, %s97
      %p104 = scmp.eq.s32.totalorder %s24, 1
      %p105 = por %p103, %p104
      %p106 = scmp.ne.s32.totalorder %s97, %s98
      %p107 = scmp.eq.s32.totalorder %s24, 0
      %p108 = por %p106, %p107
      %p109 = scmp.ne.s32.totalorder %s97, %s98
      %p110 = scmp.eq.s32.totalorder %s25, 1
      %p111 = por %p109, %p110
      %p113 = scmp.ne.s32.totalorder %s98, %s112
      %p114 = scmp.eq.s32.totalorder %s25, 0
      %p115 = por %p113, %p114
      %s117 = sadd.s32 %s116, 1
      %p120 = scmp.eq.s32.totalorder %s19, 1
      %p121 = scmp.ne.s32.totalorder %s116, %s118
      %p122 = scmp.eq.s32.totalorder %s19, 0
      %p123 = por %p121, %p122
      %p124 = scmp.ne.s32.totalorder %s116, %s118
      %p125 = scmp.eq.s32.totalorder %s24, 1
      %p126 = por %p124, %p125
      %p127 = scmp.ne.s32.totalorder %s118, %s119
      %p128 = scmp.eq.s32.totalorder %s24, 0
      %p129 = por %p127, %p128
      %p130 = scmp.ne.s32.totalorder %s118, %s119
      %p131 = scmp.eq.s32.totalorder %s25, 1
      %p132 = por %p130, %p131
      %p134 = scmp.ne.s32.totalorder %s119, %s133
      %p135 = scmp.eq.s32.totalorder %s25, 0
      %p136 = por %p134, %p135
      %s137 = ssub.s32 %s19, %s26
      %p138 = scmp.eq.s32.totalorder %s137, 0
      %s140 = sadd.s32 %s139, 1
      %s141 = scalar_select %p138, %s139, %s140
      %p144 = pneg %p138
      %p145 = scmp.eq.s32.totalorder %s19, 1
      %p146 = por %p144, %p145
      %p147 = scmp.ne.s32.totalorder %s139, %s142
      %p148 = scmp.eq.s32.totalorder %s19, 0
      %p149 = por %p147, %p148
      %p150 = scmp.ne.s32.totalorder %s139, %s142
      %p151 = scmp.eq.s32.totalorder %s24, 1
      %p152 = por %p150, %p151
      %p153 = scmp.ne.s32.totalorder %s142, %s143
      %p154 = scmp.eq.s32.totalorder %s24, 0
      %p155 = por %p153, %p154
      %p156 = scmp.ne.s32.totalorder %s142, %s143
      %p157 = scmp.eq.s32.totalorder %s25, 1
      %p158 = por %p156, %p157
      %p160 = scmp.ne.s32.totalorder %s143, %s159
      %p161 = scmp.eq.s32.totalorder %s25, 0
      %p162 = por %p160, %p161
      %p163 = scmp.le.s32.totalorder 1, %s19
      %p164 = scmp.lt.s32.totalorder %s19, 3
      %p165 = pnand %p163, %p164
      %p166 = pneg %p165
      // Predicated region
      $region9: #{tpu_custom_call.1} parent=5 // pred_check
        _
      $region10: #{tpu_custom_call.1} parent=5 // pred_check_branch
        %168 = sbr.rel (%p165) target = $region12
      $region11: #{tpu_custom_call.1} parent=5 // pred_region
        %s169 = ssub.s32 %s19, 1
        // Predicated region
        $region13: #{tpu_custom_call.1} parent=11 // pred_check
          %p170 = pneg %p66
        $region14: #{tpu_custom_call.1} parent=11 // pred_check_branch
          %172 = sbr.rel (%p170) target = $region16
        $region15: #{tpu_custom_call.1} parent=11 // pred_region
          %s174 = ssub.s32 256, 256
          %175 = vsyncadd [#allocation6], %s174
          %s176 = sshll.u32 [#allocation5], 4
          %s177 = int_to_ptr.vmem [resolvable:$true] %s176
          %182 = dma.hbm_to_vmem [thread:$0]  %s1, 256, %s177, [#allocation6], 128, 128, 8
        $region16: #{tpu_custom_call.1} parent=11 // pred_fallthru
          _
        // Predicated region
        $region17: #{tpu_custom_call.1} parent=11 // pred_check
          %p183 = pneg %p87
        $region18: #{tpu_custom_call.1} parent=11 // pred_check_branch
          %185 = sbr.rel (%p183) target = $region20
        $region19: #{tpu_custom_call.1} parent=11 // pred_region
          %s187 = ssub.s32 2048, 2048
          %188 = vsyncadd [#allocation6], %s187
          %s189 = sshll.u32 [#allocation7], 4
          %s190 = int_to_ptr.vmem [resolvable:$true] %s189
          %195 = dma.hbm_to_vmem [thread:$0]  %s2, 2048, %s190, [#allocation6], 128, 128, 8
        $region20: #{tpu_custom_call.1} parent=11 // pred_fallthru
          _
        // Predicated region
        $region21: #{tpu_custom_call.1} parent=11 // pred_check
          %p196 = pneg %p108
        $region22: #{tpu_custom_call.1} parent=11 // pred_check_branch
          %198 = sbr.rel (%p196) target = $region24
        $region23: #{tpu_custom_call.1} parent=11 // pred_region
          %s200 = ssub.s32 2048, 2048
          %201 = vsyncadd [#allocation9], %s200
          %s202 = sshll.u32 [#allocation8], 4
          %s203 = int_to_ptr.vmem [resolvable:$true] %s202
          %208 = dma.hbm_to_vmem [thread:$0]  %s3, 2048, %s203, [#allocation9], 128, 128, 8
        $region24: #{tpu_custom_call.1} parent=11 // pred_fallthru
          _
        // Predicated region
        $region25: #{tpu_custom_call.1} parent=11 // pred_check
          %p209 = pneg %p129
        $region26: #{tpu_custom_call.1} parent=11 // pred_check_branch
          %211 = sbr.rel (%p209) target = $region28
        $region27: #{tpu_custom_call.1} parent=11 // pred_region
          _
        $region28: #{tpu_custom_call.1} parent=11 // pred_fallthru
          _
      $region12: #{tpu_custom_call.1} parent=5 // pred_fallthru
        _
      %p212 = scmp.lt.s32.totalorder %s19, 2
      // Predicated region
      $region29: #{tpu_custom_call.1} parent=5 // pred_check
        %p213 = pneg %p212
      $region30: #{tpu_custom_call.1} parent=5 // pred_check_branch
        %215 = sbr.rel (%p213) target = $region32
      $region31: #{tpu_custom_call.1} parent=5 // pred_region
        // Predicated region
        $region33: #{tpu_custom_call.1} parent=31 // pred_check
          %p216 = pneg %p39
        $region34: #{tpu_custom_call.1} parent=31 // pred_check_branch
          %218 = sbr.rel (%p216) target = $region36
        $region35: #{tpu_custom_call.1} parent=31 // pred_region
          %s219 = sand.u32 %s29, 1
          %s220 = scalar_lea.sflag [#allocation3], %s219
          %s221 = sand.u32 %s29, 1
          %s222 = smul.addr %s221, 8
          %s223 = scalar_lea.vmem [#allocation2], %s222
          %s225 = ssub.s32 128, 128
          %226 = vsyncadd %s220, %s225
          %s227 = smul.addr %s19, 128
          %s228 = scalar_lea.hbm %s0, %s227
          %s230 = sshll.u32 %s223, 4
          %s231 = int_to_ptr.vmem [resolvable:$true] %s230
          %233 = dma.hbm_to_vmem [thread:$0]  %s228, 128, %s231, %s220
        $region36: #{tpu_custom_call.1} parent=31 // pred_fallthru
          _
      $region32: #{tpu_custom_call.1} parent=5 // pred_fallthru
        _
      %p234 = scmp.le.s32.totalorder 1, %s19
      %p235 = scmp.lt.s32.totalorder %s19, 3
      %p236 = pnand %p234, %p235
      %p237 = pneg %p236
      // Predicated region
      $region37: #{tpu_custom_call.1} parent=5 // pred_check
        _
      $region38: #{tpu_custom_call.1} parent=5 // pred_check_branch
        %239 = sbr.rel (%p236) target = $region40
      $region39: #{tpu_custom_call.1} parent=5 // pred_region
        %s240 = ssub.s32 %s19, 1
        %s241 = sand.u32 %s32, 1
        %s242 = scalar_lea.sflag [#allocation3], %s241
        %s243 = sand.u32 %s32, 1
        %s244 = smul.addr %s243, 8
        %s245 = scalar_lea.vmem [#allocation2], %s244
        // Predicated region
        $region41: #{tpu_custom_call.1} parent=39 // pred_check
          %p246 = pneg %p45
        $region42: #{tpu_custom_call.1} parent=39 // pred_check_branch
          %248 = sbr.rel (%p246) target = $region44
        $region43: #{tpu_custom_call.1} parent=39 // pred_region
          %249 = dma.done %s242, 128
        $region44: #{tpu_custom_call.1} parent=39 // pred_fallthru
          _
        // Predicated region
        $region45: #{tpu_custom_call.1} parent=39 // pred_check
          %p250 = pneg %p66
        $region46: #{tpu_custom_call.1} parent=39 // pred_check_branch
          %252 = sbr.rel (%p250) target = $region48
        $region47: #{tpu_custom_call.1} parent=39 // pred_region
          %253 = dma.done [#allocation6], 256
        $region48: #{tpu_custom_call.1} parent=39 // pred_fallthru
          _
        // Predicated region
        $region49: #{tpu_custom_call.1} parent=39 // pred_check
          %p254 = pneg %p87
        $region50: #{tpu_custom_call.1} parent=39 // pred_check_branch
          %256 = sbr.rel (%p254) target = $region52
        $region51: #{tpu_custom_call.1} parent=39 // pred_region
          %257 = dma.done [#allocation6], 2048
        $region52: #{tpu_custom_call.1} parent=39 // pred_fallthru
          _
        // Predicated region
        $region53: #{tpu_custom_call.1} parent=39 // pred_check
          %p258 = pneg %p108
        $region54: #{tpu_custom_call.1} parent=39 // pred_check_branch
          %260 = sbr.rel (%p258) target = $region56
        $region55: #{tpu_custom_call.1} parent=39 // pred_region
          %261 = dma.done [#allocation9], 2048
        $region56: #{tpu_custom_call.1} parent=39 // pred_fallthru
          _
        %s262 = sand.u32 %s32, 1
        %s263 = scalar_lea.sflag [#allocation3], %s262
        %s264 = sand.u32 %s32, 1
        %s265 = smul.addr %s264, 8
        %s266 = scalar_lea.vmem [#allocation2], %s265
        %p267 = pneg %p45
        %p268 = pneg %p42
        %p269 = pneg %p66
        %p270 = pneg %p63
        %p271 = pneg %p87
        %p272 = pneg %p84
        %p273 = pneg %p108
        %p274 = pneg %p105
        %p275 = pneg %p129
        %p276 = pneg %p126
        %p277 = pneg %p155
        %p278 = pneg %p152
        %s279 = sand.u32 %s142, 1
        %s280 = scalar_lea.sflag [#allocation4], %s279
        %s281 = sand.u32 %s142, 1
        %s282 = smul.addr %s281, 8
        %s283 = scalar_lea.vmem [#allocation10], %s282
        %v284 = vld [vmem:[%s245] sm:$0xff]
        %v285 = vld [vmem:[#allocation5] sm:$0xff]
        %v286 = vld [vmem:[#allocation5 + $0x8] sm:$0xff]
        %v287 = vld [vmem:[%s4] sm:$0x1]
        %v288 = vlaneseq
        %v289 = vshrl.u32 %v288, 7
        %v290 = vsub.s32 0, %v289
        %v291 = vrot.slane %v287, %v290
        %vm292 = vcmask 130048
        %v294 = vsel %vm292, %v284, 0
        %296 = vmatprep.subr.mxu0 0.0
        %297 = vmatpush1.msra.mxu0 %v285
        %298 = vmatprep.subr.mxu0 0.0
        %299 = vmatpush1.msra.mxu0 %v286
        %300 = vmatprep.subr.mxu0 0.0
        %301 = vmatpush1.msra.mxu0 0.0
        %302 = vmatprep.subr.mxu0 0.0
        %303 = vmatpush1.msra.mxu0 0.0
        %304 = vmatprep.subr.mxu0 0.0
        %305 = vmatpush1.msra.mxu0 0.0
        %306 = vmatprep.subr.mxu0 0.0
        %307 = vmatpush1.msra.mxu0 0.0
        %308 = vmatprep.subr.mxu0 0.0
        %309 = vmatpush1.msra.mxu0 0.0
        %310 = vmatprep.subr.mxu0 0.0
        %311 = vmatpush1.msra.mxu0 0.0
        %312 = vmatprep.subr.mxu0 0.0
        %313 = vmatpush1.msra.mxu0 0.0
        %314 = vmatprep.subr.mxu0 0.0
        %315 = vmatpush1.msra.mxu0 0.0
        %316 = vmatprep.subr.mxu0 0.0
        %317 = vmatpush1.msra.mxu0 0.0
        %318 = vmatprep.subr.mxu0 0.0
        %319 = vmatpush1.msra.mxu0 0.0
        %320 = vmatprep.subr.mxu0 0.0
        %321 = vmatpush1.msra.mxu0 0.0
        %322 = vmatprep.subr.mxu0 0.0
        %323 = vmatpush1.msra.mxu0 0.0
        %324 = vmatprep.subr.mxu0 0.0
        %325 = vmatpush1.msra.mxu0 0.0
        %326 = vmatprep.subr.mxu0 0.0
        %327 = vmatpush1.msra.mxu0 0.0
        %328 = vmatprep.subr.mxu0 0.0
        %329 = vmatpush1.msra.mxu0 0.0
        %330 = vmatprep.subr.mxu0 0.0
        %331 = vmatpush1.msra.mxu0 0.0
        %332 = vmatprep.subr.mxu0 0.0
        %333 = vmatpush1.msra.mxu0 0.0
        %334 = vmatprep.subr.mxu0 0.0
        %335 = vmatpush1.msra.mxu0 0.0
        %336 = vmatprep.subr.mxu0 0.0
        %337 = vmatpush1.msra.mxu0 0.0
        %338 = vmatprep.subr.mxu0 0.0
        %339 = vmatpush1.msra.mxu0 0.0
        %340 = vmatprep.subr.mxu0 0.0
        %341 = vmatpush1.msra.mxu0 0.0
        %342 = vmatprep.subr.mxu0 0.0
        %343 = vmatpush1.msra.mxu0 0.0
        %344 = vmatprep.subr.mxu0 0.0
        %345 = vmatpush1.msra.mxu0 0.0
        %346 = vmatprep.subr.mxu0 0.0
        %347 = vmatpush1.msra.mxu0 0.0
        %348 = vmatprep.subr.mxu0 0.0
        %349 = vmatpush1.msra.mxu0 0.0
        %350 = vmatprep.subr.mxu0 0.0
        %351 = vmatpush1.msra.mxu0 0.0
        %352 = vmatprep.subr.mxu0 0.0
        %353 = vmatpush1.msra.mxu0 0.0
        %354 = vmatprep.subr.mxu0 0.0
        %355 = vmatpush1.msra.mxu0 0.0
        %356 = vmatprep.subr.mxu0 0.0
        %357 = vmatpush1.msra.mxu0 0.0
        %358 = vmatprep.subr.mxu0 0.0
        %359 = vmatpush1.msra.mxu0 0.0
        %360 = vmatprep.mubr.f32.mxu0 0.0
        %361 = vmatmul.mubr.f32.gmra.mrb[0].mxu0 %v294
        %v362 = vpop.f32.mrb[0].mxu0
        %v363 = vadd.f32 %v291, %v362
        %v364 = vpop.f32.mrb[0].mxu0
        %365 = vdwg.mxu0
        %v366 = vmax.f32 %v363, 0.0
        %v367 = vld [vmem:[#allocation7] sm:$0xff]
        %v368 = vld [vmem:[#allocation7 + $0x8] sm:$0xff]
        %v369 = vld [vmem:[#allocation7 + $0x10] sm:$0xff]
        %v370 = vld [vmem:[#allocation7 + $0x18] sm:$0xff]
        %v371 = vld [vmem:[#allocation7 + $0x20] sm:$0xff]
        %v372 = vld [vmem:[#allocation7 + $0x28] sm:$0xff]
        %v373 = vld [vmem:[#allocation7 + $0x30] sm:$0xff]
        %v374 = vld [vmem:[#allocation7 + $0x38] sm:$0xff]
        %v375 = vld [vmem:[#allocation7 + $0x40] sm:$0xff]
        %v376 = vld [vmem:[#allocation7 + $0x48] sm:$0xff]
        %v377 = vld [vmem:[#allocation7 + $0x50] sm:$0xff]
        %v378 = vld [vmem:[#allocation7 + $0x58] sm:$0xff]
        %v379 = vld [vmem:[#allocation7 + $0x60] sm:$0xff]
        %v380 = vld [vmem:[#allocation7 + $0x68] sm:$0xff]
        %v381 = vld [vmem:[#allocation7 + $0x70] sm:$0xff]
        %v382 = vld [vmem:[#allocation7 + $0x78] sm:$0xff]
        %v383 = vld [vmem:[%s4 + $0x1] sm:$0x1]
        %v384 = vlaneseq
        %v385 = vshrl.u32 %v384, 7
        %v386 = vsub.s32 0, %v385
        %v387 = vrot.slane %v383, %v386
        %388 = vmatprep.subr.mxu0 0.0
        %389 = vmatpush1.msra.mxu0 %v367
        %390 = vmatprep.subr.mxu0 0.0
        %391 = vmatpush1.msra.mxu0 %v368
        %392 = vmatprep.subr.mxu0 0.0
        %393 = vmatpush1.msra.mxu0 %v369
        %394 = vmatprep.subr.mxu0 0.0
        %395 = vmatpush1.msra.mxu0 %v370
        %396 = vmatprep.subr.mxu0 0.0
        %397 = vmatpush1.msra.mxu0 %v371
        %398 = vmatprep.subr.mxu0 0.0
        %399 = vmatpush1.msra.mxu0 %v372
        %400 = vmatprep.subr.mxu0 0.0
        %401 = vmatpush1.msra.mxu0 %v373
        %402 = vmatprep.subr.mxu0 0.0
        %403 = vmatpush1.msra.mxu0 %v374
        %404 = vmatprep.subr.mxu0 0.0
        %405 = vmatpush1.msra.mxu0 %v375
        %406 = vmatprep.subr.mxu0 0.0
        %407 = vmatpush1.msra.mxu0 %v376
        %408 = vmatprep.subr.mxu0 0.0
        %409 = vmatpush1.msra.mxu0 %v377
        %410 = vmatprep.subr.mxu0 0.0
        %411 = vmatpush1.msra.mxu0 %v378
        %412 = vmatprep.subr.mxu0 0.0
        %413 = vmatpush1.msra.mxu0 %v379
        %414 = vmatprep.subr.mxu0 0.0
        %415 = vmatpush1.msra.mxu0 %v380
        %416 = vmatprep.subr.mxu0 0.0
        %417 = vmatpush1.msra.mxu0 %v381
        %418 = vmatprep.subr.mxu0 0.0
        %419 = vmatpush1.msra.mxu0 %v382
        %420 = vmatprep.subr.mxu0 0.0
        %421 = vmatpush1.msra.mxu0 0.0
        %422 = vmatprep.subr.mxu0 0.0
        %423 = vmatpush1.msra.mxu0 0.0
        %424 = vmatprep.subr.mxu0 0.0
        %425 = vmatpush1.msra.mxu0 0.0
        %426 = vmatprep.subr.mxu0 0.0
        %427 = vmatpush1.msra.mxu0 0.0
        %428 = vmatprep.subr.mxu0 0.0
        %429 = vmatpush1.msra.mxu0 0.0
        %430 = vmatprep.subr.mxu0 0.0
        %431 = vmatpush1.msra.mxu0 0.0
        %432 = vmatprep.subr.mxu0 0.0
        %433 = vmatpush1.msra.mxu0 0.0
        %434 = vmatprep.subr.mxu0 0.0
        %435 = vmatpush1.msra.mxu0 0.0
        %436 = vmatprep.subr.mxu0 0.0
        %437 = vmatpush1.msra.mxu0 0.0
        %438 = vmatprep.subr.mxu0 0.0
        %439 = vmatpush1.msra.mxu0 0.0
        %440 = vmatprep.subr.mxu0 0.0
        %441 = vmatpush1.msra.mxu0 0.0
        %442 = vmatprep.subr.mxu0 0.0
        %443 = vmatpush1.msra.mxu0 0.0
        %444 = vmatprep.subr.mxu0 0.0
        %445 = vmatpush1.msra.mxu0 0.0
        %446 = vmatprep.subr.mxu0 0.0
        %447 = vmatpush1.msra.mxu0 0.0
        %448 = vmatprep.subr.mxu0 0.0
        %449 = vmatpush1.msra.mxu0 0.0
        %450 = vmatprep.subr.mxu0 0.0
        %451 = vmatpush1.msra.mxu0 0.0
        %452 = vmatprep.mubr.f32.mxu0 0.0
        %453 = vmatmul.mubr.f32.gmra.mrb[0].mxu0 %v366
        %v454 = vpop.f32.mrb[0].mxu0
        %v455 = vadd.f32 %v387, %v454
        %v456 = vpop.f32.mrb[0].mxu0
        %457 = vdwg.mxu0
        %v458 = vmax.f32 %v455, 0.0
        %v459 = vld [vmem:[#allocation8] sm:$0xff]
        %v460 = vld [vmem:[#allocation8 + $0x8] sm:$0xff]
        %v461 = vld [vmem:[#allocation8 + $0x10] sm:$0xff]
        %v462 = vld [vmem:[#allocation8 + $0x18] sm:$0xff]
        %v463 = vld [vmem:[#allocation8 + $0x20] sm:$0xff]
        %v464 = vld [vmem:[#allocation8 + $0x28] sm:$0xff]
        %v465 = vld [vmem:[#allocation8 + $0x30] sm:$0xff]
        %v466 = vld [vmem:[#allocation8 + $0x38] sm:$0xff]
        %v467 = vld [vmem:[#allocation8 + $0x40] sm:$0xff]
        %v468 = vld [vmem:[#allocation8 + $0x48] sm:$0xff]
        %v469 = vld [vmem:[#allocation8 + $0x50] sm:$0xff]
        %v470 = vld [vmem:[#allocation8 + $0x58] sm:$0xff]
        %v471 = vld [vmem:[#allocation8 + $0x60] sm:$0xff]
        %v472 = vld [vmem:[#allocation8 + $0x68] sm:$0xff]
        %v473 = vld [vmem:[#allocation8 + $0x70] sm:$0xff]
        %v474 = vld [vmem:[#allocation8 + $0x78] sm:$0xff]
        %v475 = vld [vmem:[%s4 + $0x2] sm:$0x1]
        %v476 = vlaneseq
        %v477 = vshrl.u32 %v476, 7
        %v478 = vsub.s32 0, %v477
        %v479 = vrot.slane %v475, %v478
        %480 = vmatprep.subr.mxu0 0.0
        %481 = vmatpush1.msra.mxu0 %v459
        %482 = vmatprep.subr.mxu0 0.0
        %483 = vmatpush1.msra.mxu0 %v460
        %484 = vmatprep.subr.mxu0 0.0
        %485 = vmatpush1.msra.mxu0 %v461
        %486 = vmatprep.subr.mxu0 0.0
        %487 = vmatpush1.msra.mxu0 %v462
        %488 = vmatprep.subr.mxu0 0.0
        %489 = vmatpush1.msra.mxu0 %v463
        %490 = vmatprep.subr.mxu0 0.0
        %491 = vmatpush1.msra.mxu0 %v464
        %492 = vmatprep.subr.mxu0 0.0
        %493 = vmatpush1.msra.mxu0 %v465
        %494 = vmatprep.subr.mxu0 0.0
        %495 = vmatpush1.msra.mxu0 %v466
        %496 = vmatprep.subr.mxu0 0.0
        %497 = vmatpush1.msra.mxu0 %v467
        %498 = vmatprep.subr.mxu0 0.0
        %499 = vmatpush1.msra.mxu0 %v468
        %500 = vmatprep.subr.mxu0 0.0
        %501 = vmatpush1.msra.mxu0 %v469
        %502 = vmatprep.subr.mxu0 0.0
        %503 = vmatpush1.msra.mxu0 %v470
        %504 = vmatprep.subr.mxu0 0.0
        %505 = vmatpush1.msra.mxu0 %v471
        %506 = vmatprep.subr.mxu0 0.0
        %507 = vmatpush1.msra.mxu0 %v472
        %508 = vmatprep.subr.mxu0 0.0
        %509 = vmatpush1.msra.mxu0 %v473
        %510 = vmatprep.subr.mxu0 0.0
        %511 = vmatpush1.msra.mxu0 %v474
        %512 = vmatprep.subr.mxu0 0.0
        %513 = vmatpush1.msra.mxu0 0.0
        %514 = vmatprep.subr.mxu0 0.0
        %515 = vmatpush1.msra.mxu0 0.0
        %516 = vmatprep.subr.mxu0 0.0
        %517 = vmatpush1.msra.mxu0 0.0
        %518 = vmatprep.subr.mxu0 0.0
        %519 = vmatpush1.msra.mxu0 0.0
        %520 = vmatprep.subr.mxu0 0.0
        %521 = vmatpush1.msra.mxu0 0.0
        %522 = vmatprep.subr.mxu0 0.0
        %523 = vmatpush1.msra.mxu0 0.0
        %524 = vmatprep.subr.mxu0 0.0
        %525 = vmatpush1.msra.mxu0 0.0
        %526 = vmatprep.subr.mxu0 0.0
        %527 = vmatpush1.msra.mxu0 0.0
        %528 = vmatprep.subr.mxu0 0.0
        %529 = vmatpush1.msra.mxu0 0.0
        %530 = vmatprep.subr.mxu0 0.0
        %531 = vmatpush1.msra.mxu0 0.0
        %532 = vmatprep.subr.mxu0 0.0
        %533 = vmatpush1.msra.mxu0 0.0
        %534 = vmatprep.subr.mxu0 0.0
        %535 = vmatpush1.msra.mxu0 0.0
        %536 = vmatprep.subr.mxu0 0.0
        %537 = vmatpush1.msra.mxu0 0.0
        %538 = vmatprep.subr.mxu0 0.0
        %539 = vmatpush1.msra.mxu0 0.0
        %540 = vmatprep.subr.mxu0 0.0
        %541 = vmatpush1.msra.mxu0 0.0
        %542 = vmatprep.subr.mxu0 0.0
        %543 = vmatpush1.msra.mxu0 0.0
        %544 = vmatprep.mubr.f32.mxu0 0.0
        %545 = vmatmul.mubr.f32.gmra.mrb[0].mxu0 %v458
        %v546 = vpop.f32.mrb[0].mxu0
        %v547 = vadd.f32 %v479, %v546
        %v548 = vpop.f32.mrb[0].mxu0
        %549 = vdwg.mxu0
        %550 = vst [vmem:[%s283] sm:$0xff] %v547
        %s551 = sand.u32 %s142, 1
        %s552 = scalar_lea.sflag [#allocation4], %s551
        %s553 = sand.u32 %s142, 1
        %s554 = smul.addr %s553, 8
        %s555 = scalar_lea.vmem [#allocation10], %s554
        // Predicated region
        $region57: #{tpu_custom_call.1} parent=39 // pred_check
          %p556 = pneg %p152
        $region58: #{tpu_custom_call.1} parent=39 // pred_check_branch
          %558 = sbr.rel (%p556) target = $region60
        $region59: #{tpu_custom_call.1} parent=39 // pred_region
          %s560 = ssub.s32 128, 128
          %561 = vsyncadd %s552, %s560
          %s562 = smul.addr %s24, 128
          %s563 = scalar_lea.hbm %s5, %s562
          %s565 = sshll.u32 %s555, 4
          %s566 = int_to_ptr.vmem [resolvable:$true] %s565
          %568 = dma.vmem_to_hbm [thread:$0]  %s566, 128, %s563, %s552
        $region60: #{tpu_custom_call.1} parent=39 // pred_fallthru
          _
      $region40: #{tpu_custom_call.1} parent=5 // pred_fallthru
        _
      %p569 = scmp.le.s32.totalorder 2, %s19
      // Predicated region
      $region61: #{tpu_custom_call.1} parent=5 // pred_check
        %p570 = pneg %p569
      $region62: #{tpu_custom_call.1} parent=5 // pred_check_branch
        %572 = sbr.rel (%p570) target = $region64
      $region63: #{tpu_custom_call.1} parent=5 // pred_region
        %s573 = ssub.s32 %s19, 2
        // Predicated region
        $region65: #{tpu_custom_call.1} parent=63 // pred_check
          %p574 = pneg %p158
        $region66: #{tpu_custom_call.1} parent=63 // pred_check_branch
          %576 = sbr.rel (%p574) target = $region68
        $region67: #{tpu_custom_call.1} parent=63 // pred_region
          %s577 = sand.u32 %s143, 1
          %s578 = scalar_lea.sflag [#allocation4], %s577
          %s579 = sand.u32 %s143, 1
          %s580 = smul.addr %s579, 8
          %s581 = scalar_lea.vmem [#allocation10], %s580
          %582 = dma.done %s578, 128
        $region68: #{tpu_custom_call.1} parent=63 // pred_fallthru
          _
      $region64: #{tpu_custom_call.1} parent=5 // pred_fallthru
        _
    $region6: #{tpu_custom_call.1} parent=1 // loop_footer
      %s23 = sadd.s32 1, %s19
    $region7: #{tpu_custom_call.1} parent=1 // loop_footer_branch
      %18 = sbr.rel target = $region3
    $region8: #{tpu_custom_call.1} parent=1 // loop_exit
      _
    %583 = vsyncpa [#allocation3], 1
    %s584 = scalar_lea.sflag [#allocation3], 1
    %585 = vsyncpa %s584, 1
    %586 = vsyncpa [#allocation6], 1
    %587 = vsyncpa [#allocation9], 1
    %588 = vsyncpa [#allocation4], 1
    %s589 = scalar_lea.sflag [#allocation4], 1
    %590 = vsyncpa %s589, 1

</llo_original>
